<compile_context>
chip_gen: v7x
topology: tpu7x:2x2x1
jax: 0.10.0
libtpu: 0.0.40
codegen_flags: <defaults>
</compile_context>

<pallas_src>
import math

import jax
import jax.numpy as jnp
import numpy as np
from jax import lax
from jax.experimental import pallas as pl
from jax.experimental.pallas import tpu as pltpu

# ---------------- problem sizes (small, consistent with the module) ----------------
B = 2          # batch
L = 8          # sequence length
C = 32         # in_features (= out_features of the block)
H = 4          # num_heads
D = 8          # head_features
HD = H * D     # = 32
HID = C        # hidden_features of FeedForwardLayer = max(in, out) = C
K2 = 5         # middle conv window (window_sizes = (1, 5, 1))
EPS = 1e-5     # nn.LayerNorm default eps
LANE = 128     # TPU lane-group width

# row offsets inside the packed bf16 weight slab (wo | w1 | w2-flat | w3)
W_WO_OFF = 0
W_W1_OFF = HD
W_W2_OFF = HD + C
W_W3_OFF = HD + C + K2 * HID
WPACK_ROWS = HD + C + K2 * HID + HID      # 256


def _layer_norm(a, gamma, beta):
    mean = jnp.mean(a, axis=-1, keepdims=True)
    var = jnp.mean((a - mean) * (a - mean), axis=-1, keepdims=True)
    return (a - mean) * lax.rsqrt(var + EPS) * gamma + beta


# ------------------------------- fused kernel --------------------------------------
def encoder_block_kernel(x_ref, wqkv_ref, wpack_ref, lnp_ref, maskp_ref, o_ref):
    bb = x_ref.shape[0]              # batch rows handled by this grid step (static)
    N = bb * L                       # fused (batch, seq) rows
    HM = H * N                       # head-major score rows

    # ---- packed-parameter views (static slices) -------------------------------------
    wo_w = wpack_ref[W_WO_OFF:W_WO_OFF + HD, :]        # (HD, C)   bf16
    w1_w = wpack_ref[W_W1_OFF:W_W1_OFF + C, :]         # (C, HID)  bf16
    w3_w = wpack_ref[W_W3_OFF:W_W3_OFF + HID, :]       # (HID, C)  bf16
    g1 = lnp_ref[0:1, :]; b1 = lnp_ref[1:2, :]
    g2 = lnp_ref[2:3, :]; b2 = lnp_ref[3:4, :]
    head_mask = maskp_ref[0:HM, :]                     # (H*N, HD) f32 {0,1}
    tap0 = HM                                          # per-tap conv masks start row
    batch0 = HM + K2 * N                               # cross-batch score bias start row

    x = x_ref[...].reshape(N, C)                       # (N, C) f32
    x_bf = x.astype(jnp.bfloat16)

    # ---- fused QKV projection: one MXU pass; 1/sqrt(D) folded into Wq; q/k/v are
    #      lane-group aligned (offsets 0 / 128 / 256) so the slices need no rotates ---
    qkv = jnp.dot(x_bf, wqkv_ref[...], preferred_element_type=jnp.float32)  # (N, 384)
    q = qkv[:, 0:HD]
    k = qkv[:, LANE:LANE + HD]
    v = qkv[:, 2 * LANE:2 * LANE + HD]

    # ---- all heads at once: block-diagonal head-major score matmul ------------------
    # A[(h, n), c] = q[n, c] iff head(c) == h, so S = A @ K^T gives per-head scores
    # S[(h, n), m] for every head / batch / query row in one matmul + one softmax.
    q_tiled = jnp.concatenate([q] * H, axis=0)         # (H*N, HD)
    a_bf = (q_tiled * head_mask).astype(jnp.bfloat16)
    s = jnp.einsum('rc,mc->rm', a_bf, k.astype(jnp.bfloat16),
                   preferred_element_type=jnp.float32)  # (H*N, N) f32
    if bb > 1:   # block attention across batch elements (additive bias on f32 scores)
        s = s + maskp_ref[batch0:batch0 + HM, 0:N]

    # one softmax stream over all (head, batch, query) rows
    s = s - jnp.max(s, axis=-1, keepdims=True)
    p = jnp.exp(s)
    p = p * pl.reciprocal(jnp.sum(p, axis=-1, keepdims=True), approx=True)

    o_heads = jnp.dot(p.astype(jnp.bfloat16), v.astype(jnp.bfloat16),
                      preferred_element_type=jnp.float32)  # (H*N, HD)
    # keep each row-block's own head lanes and collapse heads with H-1 static adds
    m = o_heads * head_mask
    att = m[0:N, :]
    for h in range(1, H):
        att = att + m[h * N:(h + 1) * N, :]                # (N, HD)

    y = jnp.dot(att.astype(jnp.bfloat16), wo_w,
                preferred_element_type=jnp.float32)        # (N, C)

    # ---- residual + LayerNorm 1 (dropout1 = identity, eval mode) ---------------------
    z = _layer_norm(y + x, g1, b1)                         # (N, C)

    # ---- FeedForwardLayer: ReLU -> Conv1d(k=1) -> ReLU -> Conv1d(k=5,p=2)
    #                        -> ReLU -> Conv1d(k=1)   (negative_slope = 0) ------------
    h1 = jnp.dot(jnp.maximum(z, 0.0).astype(jnp.bfloat16), w1_w,
                 preferred_element_type=jnp.float32)       # (N, HID)
    h1 = jnp.maximum(h1, 0.0)

    # middle conv as K2 tiny accumulating matmuls; boundary zero-padding comes from
    # precomputed per-tap row masks applied AFTER the roll (the roll wraps across rows;
    # the mask kills every wrapped / out-of-sequence row, incl. cross-batch wraps).
    acc = None
    for t in range(K2):
        off = t - K2 // 2                                  # -2 .. 2
        if off == 0:
            tap = h1
        else:
            tap = pltpu.roll(h1, shift=(-off) % N, axis=0)         # row n -> h1[n+off]
            tap = tap * maskp_ref[tap0 + t * N:tap0 + (t + 1) * N, :]
        c_t = jnp.dot(tap.astype(jnp.bfloat16),
                      wpack_ref[W_W2_OFF + t * HID:W_W2_OFF + (t + 1) * HID, :],
                      preferred_element_type=jnp.float32)  # (N, HID)
        acc = c_t if acc is None else acc + c_t

    w_out = jnp.dot(jnp.maximum(acc, 0.0).astype(jnp.bfloat16), w3_w,
                    preferred_element_type=jnp.float32)    # (N, C)

    # ---- residual + LayerNorm 2 (dropout2 = identity) --------------------------------
    out = _layer_norm(w_out + z, g2, b2)
    o_ref[...] = out.reshape(bb, L, C)


# ------------------------------ host-side param prep --------------------------------
def prepare_kernel_params(params):
    """One-time prep: fuse QKV (1/sqrt(D) folded into Wq, each of q/k/v in its own
    128-lane group), pack the bf16 matmul weights into one slab, pack LayerNorm
    vectors into one (4, C) array."""
    wq, wk, wv, wo, g1, b1, w1, w2, w3, g2, b2 = params
    wqkv = jnp.zeros((C, 3 * LANE), jnp.float32)
    wqkv = wqkv.at[:, 0:HD].set(wq * (1.0 / math.sqrt(D)))
    wqkv = wqkv.at[:, LANE:LANE + HD].set(wk)
    wqkv = wqkv.at[:, 2 * LANE:2 * LANE + HD].set(wv)
    wpack = jnp.concatenate([wo, w1, w2.reshape(K2 * HID, HID), w3], axis=0)  # (256, C)
    lnp = jnp.concatenate([g1, b1, g2, b2], axis=0)                           # (4, C)
    return (wqkv.astype(jnp.bfloat16), wpack.astype(jnp.bfloat16), lnp)


def build_mask_pack(bb):
    """All masks the kernel needs, precomputed host-side (compile-time constants in
    spirit; shipped as one f32 VMEM input so no iota/div/mod/cmp chains run on-core)."""
    N = bb * L
    HM = H * N
    parts = []
    # head mask: row block h keeps only head-h feature lanes                  (H*N, HD)
    head = (np.arange(HM)[:, None] // N) == (np.arange(HD)[None, :] // D)
    parts.append(head.astype(np.float32))
    # per-tap conv padding row masks, lane-replicated (no runtime broadcast)  (K2*N, HID)
    pos = np.arange(N) % L
    for t in range(K2):
        off = t - K2 // 2
        valid = ((pos + off >= 0) & (pos + off < L)).astype(np.float32)
        parts.append(np.repeat(valid[:, None], HID, axis=1))
    # additive cross-batch score bias (0 allowed / -1e30 blocked), lane-padded to C
    if bb > 1:
        assert N <= C
        rb = (np.arange(HM) % N)[:, None] // L
        cb = np.arange(N)[None, :] // L
        bias = np.where(rb == cb, 0.0, -1e30).astype(np.float32)             # (H*N, N)
        parts.append(np.pad(bias, ((0, 0), (0, C - N))))
    return jnp.asarray(np.concatenate(parts, axis=0))                        # (rows, C)


# ------------------------------------ wrapper ----------------------------------------
def transformer_encoder_block(x, kparams, *, per_batch_grid=False):
    """per_batch_grid=False (default): one grid step handles the whole batch — best on
    single-TC v5e/v6e and the likely winner on v7x at this size too (the 2-TC split
    duplicates every weight DMA and pays per-core step overhead).  per_batch_grid=True
    keeps the (B,) "parallel" grid for benchmarking the 2-TensorCore split on v7x."""
    wqkv, wpack, lnp = kparams
    bb = 1 if per_batch_grid else B
    nsteps = B // bb
    maskp = build_mask_pack(bb)
    full2d = lambda b: (0, 0)

    return pl.pallas_call(
        encoder_block_kernel,
        out_shape=jax.ShapeDtypeStruct((B, L, C), jnp.float32),
        grid=(nsteps,),
        in_specs=[
            pl.BlockSpec((bb, L, C), lambda b: (b, 0, 0)),    # x
            pl.BlockSpec((C, 3 * LANE), full2d),              # fused, lane-padded wqkv (bf16)
            pl.BlockSpec((WPACK_ROWS, C), full2d),            # packed bf16 matmul weights
            pl.BlockSpec((4, C), full2d),                     # packed LayerNorm params
            pl.BlockSpec(maskp.shape, full2d),                # packed precomputed masks (f32)
        ],
        out_specs=pl.BlockSpec((bb, L, C), lambda b: (b, 0, 0)),
        compiler_params=pltpu.CompilerParams(
            dimension_semantics=("parallel",) if nsteps > 1 else ("arbitrary",)),
    )(x, wqkv, wpack, lnp, maskp)


# ---------------- pure-JAX reference (f32, raw params) ------------------------------
def reference_forward(x, params):
    (wq, wk, wv, wo, g1, b1, w1, w2, w3, g2, b2) = params
    q = (x @ wq).reshape(B, L, H, D)
    k = (x @ wk).reshape(B, L, H, D)
    v = (x @ wv).reshape(B, L, H, D)
    s = jnp.einsum("blhd,bmhd->bhlm", q, k) / math.sqrt(D)
    p = jax.nn.softmax(s, axis=-1)
    att = jnp.einsum("bhlm,bmhd->blhd", p, v).reshape(B, L, HD)
    y = att @ wo
    z = _layer_norm(y + x, g1[0], b1[0])

    h1 = jnp.maximum(jnp.maximum(z, 0.0) @ w1, 0.0)                 # (B, L, HID)
    pad = K2 // 2
    h1p = jnp.pad(h1, ((0, 0), (pad, pad), (0, 0)))
    acc = jnp.zeros((B, L, HID), jnp.float32)
    for t in range(K2):
        acc = acc + h1p[:, t:t + L, :] @ w2[t]
    w_out = jnp.maximum(acc, 0.0) @ w3
    return _layer_norm(w_out + z, g2[0], b2[0])


# ---------------- deterministic parameter construction ------------------------------
def make_params(key):
    ks = jax.random.split(key, 8)

    def kaiming_uniform(k, shape, fan_in):
        bound = math.sqrt(6.0 / fan_in)
        return jax.random.uniform(k, shape, jnp.float32, -bound, bound)

    # attention projections (bias-free linear layers)
    wq = kaiming_uniform(ks[0], (C, HD), C)
    wk = kaiming_uniform(ks[1], (C, HD), C)
    wv = kaiming_uniform(ks[2], (C, HD), C)
    wo = kaiming_uniform(ks[3], (HD, C), HD)
    # LayerNorm params (PyTorch defaults: ones / zeros), stored as (1, C)
    g1 = jnp.ones((1, C), jnp.float32)
    b1 = jnp.zeros((1, C), jnp.float32)
    g2 = jnp.ones((1, C), jnp.float32)
    b2 = jnp.zeros((1, C), jnp.float32)
    # FeedForwardLayer convs (bias=False), stored as (C_in, C_out) matmul weights:
    #   w1[i, o] = conv1.weight[o, i, 0]    (kernel_size 1)
    #   w2[t, i, o] = conv2.weight[o, i, t] (kernel_size 5)
    #   w3[i, o] = conv3.weight[o, i, 0]    (kernel_size 1)
    w1 = kaiming_uniform(ks[4], (C, HID), C * 1)
    w2 = kaiming_uniform(ks[5], (K2, HID, HID), HID * K2)
    w3 = kaiming_uniform(ks[6], (HID, C), HID * 1)
    return (wq, wk, wv, wo, g1, b1, w1, w2, w3, g2, b2)


if __name__ == "__main__":
    key = jax.random.PRNGKey(0)
    kx, kp = jax.random.split(key)
    x = jax.random.normal(kx, (B, L, C), jnp.float32)
    params = make_params(kp)
    kparams = prepare_kernel_params(params)

    out = jax.block_until_ready(transformer_encoder_block(x, kparams))

    ref = reference_forward(x, params)
    # Tolerance relaxed from 2e-4: matmul operands are bf16 (MXU-native path) and the
    # softmax uses the EUP approx reciprocal; accumulation / elementwise math stays f32.
    np.testing.assert_allclose(np.asarray(out), np.asarray(ref), atol=5e-2, rtol=5e-2)

    print("KERNEL_OK")
</pallas_src>

<mosaic_0001>
module attributes {stable_mosaic.version = 11 : i64} {
  func.func @encoder_block_kernel(%arg0: i32, %arg1: memref<2x8x32xf32, #tpu.memory_space<vmem>>, %arg2: memref<32x384xbf16, #tpu.memory_space<vmem>>, %arg3: memref<256x32xbf16, #tpu.memory_space<vmem>>, %arg4: memref<4x32xf32, #tpu.memory_space<vmem>>, %arg5: memref<208x32xf32, #tpu.memory_space<vmem>>, %arg6: memref<2x8x32xf32, #tpu.memory_space<vmem>>) attributes {dimension_semantics = [#tpu.dimension_semantics<arbitrary>], iteration_bounds = array<i64: 1>, scalar_prefetch = 0 : i64, scratch_operands = 0 : i64, tpu.core_type = #tpu.core_type<tc>, window_params = [{transform_indices = @transform_0, window_bounds = array<i64: 2, 8, 32>}, {pipeline_mode = #tpu.pipeline_mode<synchronous>, transform_indices = @transform_1, window_bounds = array<i64: 32, 384>}, {pipeline_mode = #tpu.pipeline_mode<synchronous>, transform_indices = @transform_2, window_bounds = array<i64: 256, 32>}, {pipeline_mode = #tpu.pipeline_mode<synchronous>, transform_indices = @transform_3, window_bounds = array<i64: 4, 32>}, {pipeline_mode = #tpu.pipeline_mode<synchronous>, transform_indices = @transform_4, window_bounds = array<i64: 208, 32>}, {transform_indices = @transform_5, window_bounds = array<i64: 2, 8, 32>}]} {
    %c0 = arith.constant 0 : index
    %c0_0 = arith.constant 0 : index
    %0 = vector.load %arg3[%c0, %c0_0] : memref<256x32xbf16, #tpu.memory_space<vmem>>, vector<32x32xbf16>
    %c32 = arith.constant 32 : index
    %c0_1 = arith.constant 0 : index
    %1 = vector.load %arg3[%c32, %c0_1] : memref<256x32xbf16, #tpu.memory_space<vmem>>, vector<32x32xbf16>
    %c224 = arith.constant 224 : index
    %c0_2 = arith.constant 0 : index
    %2 = vector.load %arg3[%c224, %c0_2] : memref<256x32xbf16, #tpu.memory_space<vmem>>, vector<32x32xbf16>
    %c0_3 = arith.constant 0 : index
    %c0_4 = arith.constant 0 : index
    %3 = vector.load %arg4[%c0_3, %c0_4] : memref<4x32xf32, #tpu.memory_space<vmem>>, vector<1x32xf32>
    %c1 = arith.constant 1 : index
    %c0_5 = arith.constant 0 : index
    %4 = vector.load %arg4[%c1, %c0_5] : memref<4x32xf32, #tpu.memory_space<vmem>>, vector<1x32xf32>
    %c2 = arith.constant 2 : index
    %c0_6 = arith.constant 0 : index
    %5 = vector.load %arg4[%c2, %c0_6] : memref<4x32xf32, #tpu.memory_space<vmem>>, vector<1x32xf32>
    %c3 = arith.constant 3 : index
    %c0_7 = arith.constant 0 : index
    %6 = vector.load %arg4[%c3, %c0_7] : memref<4x32xf32, #tpu.memory_space<vmem>>, vector<1x32xf32>
    %c0_8 = arith.constant 0 : index
    %c0_9 = arith.constant 0 : index
    %7 = vector.load %arg5[%c0_8, %c0_9] : memref<208x32xf32, #tpu.memory_space<vmem>>, vector<64x32xf32>
    %c0_10 = arith.constant 0 : index
    %c0_11 = arith.constant 0 : index
    %c0_12 = arith.constant 0 : index
    %8 = vector.load %arg1[%c0_10, %c0_11, %c0_12] : memref<2x8x32xf32, #tpu.memory_space<vmem>>, vector<2x8x32xf32>
    %9 = vector.shape_cast %8 : vector<2x8x32xf32> to vector<16x32xf32>
    %10 = arith.truncf %9 : vector<16x32xf32> to vector<16x32xbf16>
    %c0_13 = arith.constant 0 : index
    %c0_14 = arith.constant 0 : index
    %11 = vector.load %arg2[%c0_13, %c0_14] : memref<32x384xbf16, #tpu.memory_space<vmem>>, vector<32x384xbf16>
    %cst = arith.constant dense<0.000000e+00> : vector<16x384xf32>
    %12 = tpu.matmul %10, %11, %cst {dimension_numbers = #tpu.dot_dimension_numbers<[1], [0], [0], [1], [0, 0, 1, 1], [], []>} : vector<16x32xbf16>, vector<32x384xbf16>, vector<16x384xf32> -> vector<16x384xf32>
    %13 = vector.extract_strided_slice %12 {offsets = [0, 0], sizes = [16, 32], strides = [1, 1]} : vector<16x384xf32> to vector<16x32xf32>
    %14 = vector.extract_strided_slice %12 {offsets = [0, 128], sizes = [16, 32], strides = [1, 1]} : vector<16x384xf32> to vector<16x32xf32>
    %15 = vector.extract_strided_slice %12 {offsets = [0, 256], sizes = [16, 32], strides = [1, 1]} : vector<16x384xf32> to vector<16x32xf32>
    %16 = tpu.concatenate %13, %13, %13, %13 in 0 : vector<16x32xf32>, vector<16x32xf32>, vector<16x32xf32>, vector<16x32xf32> -> vector<64x32xf32>
    %17 = arith.mulf %16, %7 : vector<64x32xf32>
    %18 = arith.truncf %17 : vector<64x32xf32> to vector<64x32xbf16>
    %19 = arith.truncf %14 : vector<16x32xf32> to vector<16x32xbf16>
    "tpu.trace_start"() <{level = 10 : i32, message = "rc,mc->rm"}> : () -> ()
    %cst_15 = arith.constant dense<0.000000e+00> : vector<64x16xf32>
    %20 = tpu.matmul %18, %19, %cst_15 {dimension_numbers = #tpu.dot_dimension_numbers<[1], [1], [0], [0], [0, 0, 1, 0], [], []>} : vector<64x32xbf16>, vector<16x32xbf16>, vector<64x16xf32> -> vector<64x16xf32>
    "tpu.trace_stop"() : () -> ()
    %c144 = arith.constant 144 : index
    %c0_16 = arith.constant 0 : index
    %21 = vector.load %arg5[%c144, %c0_16] : memref<208x32xf32, #tpu.memory_space<vmem>>, vector<64x16xf32>
    %22 = arith.addf %20, %21 : vector<64x16xf32>
    %cst_17 = arith.constant dense<0xFF800000> : vector<64xf32>
    %23 = vector.multi_reduction <maximumf>, %22, %cst_17 [1] : vector<64x16xf32> to vector<64xf32>
    %24 = vector.shape_cast %23 : vector<64xf32> to vector<64x1xf32>
    %25 = vector.broadcast %24 : vector<64x1xf32> to vector<64x16xf32>
    %26 = arith.subf %22, %25 : vector<64x16xf32>
    %27 = math.exp %26 : vector<64x16xf32>
    %cst_18 = arith.constant dense<0.000000e+00> : vector<64xf32>
    %28 = vector.multi_reduction <add>, %27, %cst_18 [1] : vector<64x16xf32> to vector<64xf32>
    %29 = vector.shape_cast %28 : vector<64xf32> to vector<64x1xf32>
    %30 = tpu.reciprocal %29 {approx = true} : vector<64x1xf32> -> vector<64x1xf32>
    %31 = vector.broadcast %30 : vector<64x1xf32> to vector<64x16xf32>
    %32 = arith.mulf %27, %31 : vector<64x16xf32>
    %33 = arith.truncf %32 : vector<64x16xf32> to vector<64x16xbf16>
    %34 = arith.truncf %15 : vector<16x32xf32> to vector<16x32xbf16>
    %cst_19 = arith.constant dense<0.000000e+00> : vector<64x32xf32>
    %35 = tpu.matmul %33, %34, %cst_19 {dimension_numbers = #tpu.dot_dimension_numbers<[1], [0], [0], [1], [0, 0, 1, 1], [], []>} : vector<64x16xbf16>, vector<16x32xbf16>, vector<64x32xf32> -> vector<64x32xf32>
    %36 = arith.mulf %35, %7 : vector<64x32xf32>
    %37 = vector.extract_strided_slice %36 {offsets = [0, 0], sizes = [16, 32], strides = [1, 1]} : vector<64x32xf32> to vector<16x32xf32>
    %38 = vector.extract_strided_slice %36 {offsets = [16, 0], sizes = [16, 32], strides = [1, 1]} : vector<64x32xf32> to vector<16x32xf32>
    %39 = arith.addf %37, %38 : vector<16x32xf32>
    %40 = vector.extract_strided_slice %36 {offsets = [32, 0], sizes = [16, 32], strides = [1, 1]} : vector<64x32xf32> to vector<16x32xf32>
    %41 = arith.addf %39, %40 : vector<16x32xf32>
    %42 = vector.extract_strided_slice %36 {offsets = [48, 0], sizes = [16, 32], strides = [1, 1]} : vector<64x32xf32> to vector<16x32xf32>
    %43 = arith.addf %41, %42 : vector<16x32xf32>
    %44 = arith.truncf %43 : vector<16x32xf32> to vector<16x32xbf16>
    %cst_20 = arith.constant dense<0.000000e+00> : vector<16x32xf32>
    %45 = tpu.matmul %44, %0, %cst_20 {dimension_numbers = #tpu.dot_dimension_numbers<[1], [0], [0], [1], [0, 0, 1, 1], [], []>} : vector<16x32xbf16>, vector<32x32xbf16>, vector<16x32xf32> -> vector<16x32xf32>
    %46 = arith.addf %45, %9 : vector<16x32xf32>
    %cst_21 = arith.constant dense<0.000000e+00> : vector<16xf32>
    %47 = vector.multi_reduction <add>, %46, %cst_21 [1] : vector<16x32xf32> to vector<16xf32>
    %48 = vector.shape_cast %47 : vector<16xf32> to vector<16x1xf32>
    %cst_22 = arith.constant 3.200000e+01 : f32
    %49 = vector.broadcast %cst_22 : f32 to vector<16x1xf32>
    %50 = arith.divf %48, %49 : vector<16x1xf32>
    %51 = vector.broadcast %50 : vector<16x1xf32> to vector<16x32xf32>
    %52 = arith.subf %46, %51 : vector<16x32xf32>
    %53 = vector.broadcast %50 : vector<16x1xf32> to vector<16x32xf32>
    %54 = arith.subf %46, %53 : vector<16x32xf32>
    %55 = arith.mulf %52, %54 : vector<16x32xf32>
    %cst_23 = arith.constant dense<0.000000e+00> : vector<16xf32>
    %56 = vector.multi_reduction <add>, %55, %cst_23 [1] : vector<16x32xf32> to vector<16xf32>
    %57 = vector.shape_cast %56 : vector<16xf32> to vector<16x1xf32>
    %cst_24 = arith.constant 3.200000e+01 : f32
    %58 = vector.broadcast %cst_24 : f32 to vector<16x1xf32>
    %59 = arith.divf %57, %58 : vector<16x1xf32>
    %60 = vector.broadcast %50 : vector<16x1xf32> to vector<16x32xf32>
    %61 = arith.subf %46, %60 : vector<16x32xf32>
    %cst_25 = arith.constant 9.99999974E-6 : f32
    %62 = vector.broadcast %cst_25 : f32 to vector<16x1xf32>
    %63 = arith.addf %59, %62 : vector<16x1xf32>
    %64 = math.rsqrt %63 : vector<16x1xf32>
    %65 = vector.broadcast %64 : vector<16x1xf32> to vector<16x32xf32>
    %66 = arith.mulf %61, %65 : vector<16x32xf32>
    %67 = vector.broadcast %3 : vector<1x32xf32> to vector<16x32xf32>
    %68 = arith.mulf %66, %67 : vector<16x32xf32>
    %69 = vector.broadcast %4 : vector<1x32xf32> to vector<16x32xf32>
    %70 = arith.addf %68, %69 : vector<16x32xf32>
    %cst_26 = arith.constant 0.000000e+00 : f32
    %71 = vector.broadcast %cst_26 : f32 to vector<16x32xf32>
    %72 = arith.maximumf %70, %71 : vector<16x32xf32>
    %73 = arith.truncf %72 : vector<16x32xf32> to vector<16x32xbf16>
    %cst_27 = arith.constant dense<0.000000e+00> : vector<16x32xf32>
    %74 = tpu.matmul %73, %1, %cst_27 {dimension_numbers = #tpu.dot_dimension_numbers<[1], [0], [0], [1], [0, 0, 1, 1], [], []>} : vector<16x32xbf16>, vector<32x32xbf16>, vector<16x32xf32> -> vector<16x32xf32>
    %cst_28 = arith.constant 0.000000e+00 : f32
    %75 = vector.broadcast %cst_28 : f32 to vector<16x32xf32>
    %76 = arith.maximumf %74, %75 : vector<16x32xf32>
    %c2_i32 = arith.constant 2 : i32
    %77 = tpu.dynamic_rotate %76 by %c2_i32 dim 0 : vector<16x32xf32>, i32 -> vector<16x32xf32>
    %c64 = arith.constant 64 : index
    %c0_29 = arith.constant 0 : index
    %78 = vector.load %arg5[%c64, %c0_29] : memref<208x32xf32, #tpu.memory_space<vmem>>, vector<16x32xf32>
    %79 = arith.mulf %77, %78 : vector<16x32xf32>
    %80 = arith.truncf %79 : vector<16x32xf32> to vector<16x32xbf16>
    %c64_30 = arith.constant 64 : index
    %c0_31 = arith.constant 0 : index
    %81 = vector.load %arg3[%c64_30, %c0_31] : memref<256x32xbf16, #tpu.memory_space<vmem>>, vector<32x32xbf16>
    %cst_32 = arith.constant dense<0.000000e+00> : vector<16x32xf32>
    %82 = tpu.matmul %80, %81, %cst_32 {dimension_numbers = #tpu.dot_dimension_numbers<[1], [0], [0], [1], [0, 0, 1, 1], [], []>} : vector<16x32xbf16>, vector<32x32xbf16>, vector<16x32xf32> -> vector<16x32xf32>
    %c1_i32 = arith.constant 1 : i32
    %83 = tpu.dynamic_rotate %76 by %c1_i32 dim 0 : vector<16x32xf32>, i32 -> vector<16x32xf32>
    %c80 = arith.constant 80 : index
    %c0_33 = arith.constant 0 : index
    %84 = vector.load %arg5[%c80, %c0_33] : memref<208x32xf32, #tpu.memory_space<vmem>>, vector<16x32xf32>
    %85 = arith.mulf %83, %84 : vector<16x32xf32>
    %86 = arith.truncf %85 : vector<16x32xf32> to vector<16x32xbf16>
    %c96 = arith.constant 96 : index
    %c0_34 = arith.constant 0 : index
    %87 = vector.load %arg3[%c96, %c0_34] : memref<256x32xbf16, #tpu.memory_space<vmem>>, vector<32x32xbf16>
    %cst_35 = arith.constant dense<0.000000e+00> : vector<16x32xf32>
    %88 = tpu.matmul %86, %87, %cst_35 {dimension_numbers = #tpu.dot_dimension_numbers<[1], [0], [0], [1], [0, 0, 1, 1], [], []>} : vector<16x32xbf16>, vector<32x32xbf16>, vector<16x32xf32> -> vector<16x32xf32>
    %89 = arith.addf %82, %88 : vector<16x32xf32>
    %90 = arith.truncf %76 : vector<16x32xf32> to vector<16x32xbf16>
    %c128 = arith.constant 128 : index
    %c0_36 = arith.constant 0 : index
    %91 = vector.load %arg3[%c128, %c0_36] : memref<256x32xbf16, #tpu.memory_space<vmem>>, vector<32x32xbf16>
    %cst_37 = arith.constant dense<0.000000e+00> : vector<16x32xf32>
    %92 = tpu.matmul %90, %91, %cst_37 {dimension_numbers = #tpu.dot_dimension_numbers<[1], [0], [0], [1], [0, 0, 1, 1], [], []>} : vector<16x32xbf16>, vector<32x32xbf16>, vector<16x32xf32> -> vector<16x32xf32>
    %93 = arith.addf %89, %92 : vector<16x32xf32>
    %c15_i32 = arith.constant 15 : i32
    %94 = tpu.dynamic_rotate %76 by %c15_i32 dim 0 : vector<16x32xf32>, i32 -> vector<16x32xf32>
    %c112 = arith.constant 112 : index
    %c0_38 = arith.constant 0 : index
    %95 = vector.load %arg5[%c112, %c0_38] : memref<208x32xf32, #tpu.memory_space<vmem>>, vector<16x32xf32>
    %96 = arith.mulf %94, %95 : vector<16x32xf32>
    %97 = arith.truncf %96 : vector<16x32xf32> to vector<16x32xbf16>
    %c160 = arith.constant 160 : index
    %c0_39 = arith.constant 0 : index
    %98 = vector.load %arg3[%c160, %c0_39] : memref<256x32xbf16, #tpu.memory_space<vmem>>, vector<32x32xbf16>
    %cst_40 = arith.constant dense<0.000000e+00> : vector<16x32xf32>
    %99 = tpu.matmul %97, %98, %cst_40 {dimension_numbers = #tpu.dot_dimension_numbers<[1], [0], [0], [1], [0, 0, 1, 1], [], []>} : vector<16x32xbf16>, vector<32x32xbf16>, vector<16x32xf32> -> vector<16x32xf32>
    %100 = arith.addf %93, %99 : vector<16x32xf32>
    %c14_i32 = arith.constant 14 : i32
    %101 = tpu.dynamic_rotate %76 by %c14_i32 dim 0 : vector<16x32xf32>, i32 -> vector<16x32xf32>
    %c128_41 = arith.constant 128 : index
    %c0_42 = arith.constant 0 : index
    %102 = vector.load %arg5[%c128_41, %c0_42] : memref<208x32xf32, #tpu.memory_space<vmem>>, vector<16x32xf32>
    %103 = arith.mulf %101, %102 : vector<16x32xf32>
    %104 = arith.truncf %103 : vector<16x32xf32> to vector<16x32xbf16>
    %c192 = arith.constant 192 : index
    %c0_43 = arith.constant 0 : index
    %105 = vector.load %arg3[%c192, %c0_43] : memref<256x32xbf16, #tpu.memory_space<vmem>>, vector<32x32xbf16>
    %cst_44 = arith.constant dense<0.000000e+00> : vector<16x32xf32>
    %106 = tpu.matmul %104, %105, %cst_44 {dimension_numbers = #tpu.dot_dimension_numbers<[1], [0], [0], [1], [0, 0, 1, 1], [], []>} : vector<16x32xbf16>, vector<32x32xbf16>, vector<16x32xf32> -> vector<16x32xf32>
    %107 = arith.addf %100, %106 : vector<16x32xf32>
    %cst_45 = arith.constant 0.000000e+00 : f32
    %108 = vector.broadcast %cst_45 : f32 to vector<16x32xf32>
    %109 = arith.maximumf %107, %108 : vector<16x32xf32>
    %110 = arith.truncf %109 : vector<16x32xf32> to vector<16x32xbf16>
    %cst_46 = arith.constant dense<0.000000e+00> : vector<16x32xf32>
    %111 = tpu.matmul %110, %2, %cst_46 {dimension_numbers = #tpu.dot_dimension_numbers<[1], [0], [0], [1], [0, 0, 1, 1], [], []>} : vector<16x32xbf16>, vector<32x32xbf16>, vector<16x32xf32> -> vector<16x32xf32>
    %112 = arith.addf %111, %70 : vector<16x32xf32>
    %cst_47 = arith.constant dense<0.000000e+00> : vector<16xf32>
    %113 = vector.multi_reduction <add>, %112, %cst_47 [1] : vector<16x32xf32> to vector<16xf32>
    %114 = vector.shape_cast %113 : vector<16xf32> to vector<16x1xf32>
    %cst_48 = arith.constant 3.200000e+01 : f32
    %115 = vector.broadcast %cst_48 : f32 to vector<16x1xf32>
    %116 = arith.divf %114, %115 : vector<16x1xf32>
    %117 = vector.broadcast %116 : vector<16x1xf32> to vector<16x32xf32>
    %118 = arith.subf %112, %117 : vector<16x32xf32>
    %119 = vector.broadcast %116 : vector<16x1xf32> to vector<16x32xf32>
    %120 = arith.subf %112, %119 : vector<16x32xf32>
    %121 = arith.mulf %118, %120 : vector<16x32xf32>
    %cst_49 = arith.constant dense<0.000000e+00> : vector<16xf32>
    %122 = vector.multi_reduction <add>, %121, %cst_49 [1] : vector<16x32xf32> to vector<16xf32>
    %123 = vector.shape_cast %122 : vector<16xf32> to vector<16x1xf32>
    %cst_50 = arith.constant 3.200000e+01 : f32
    %124 = vector.broadcast %cst_50 : f32 to vector<16x1xf32>
    %125 = arith.divf %123, %124 : vector<16x1xf32>
    %126 = vector.broadcast %116 : vector<16x1xf32> to vector<16x32xf32>
    %127 = arith.subf %112, %126 : vector<16x32xf32>
    %cst_51 = arith.constant 9.99999974E-6 : f32
    %128 = vector.broadcast %cst_51 : f32 to vector<16x1xf32>
    %129 = arith.addf %125, %128 : vector<16x1xf32>
    %130 = math.rsqrt %129 : vector<16x1xf32>
    %131 = vector.broadcast %130 : vector<16x1xf32> to vector<16x32xf32>
    %132 = arith.mulf %127, %131 : vector<16x32xf32>
    %133 = vector.broadcast %5 : vector<1x32xf32> to vector<16x32xf32>
    %134 = arith.mulf %132, %133 : vector<16x32xf32>
    %135 = vector.broadcast %6 : vector<1x32xf32> to vector<16x32xf32>
    %136 = arith.addf %134, %135 : vector<16x32xf32>
    %137 = vector.shape_cast %136 : vector<16x32xf32> to vector<2x8x32xf32>
    %c0_52 = arith.constant 0 : index
    %c0_53 = arith.constant 0 : index
    %c0_54 = arith.constant 0 : index
    %138 = vector.load %arg6[%c0_52, %c0_53, %c0_54] : memref<2x8x32xf32, #tpu.memory_space<vmem>>, vector<2x8x32xf32>
    tpu.vector_store %arg6[%c0_52, %c0_53, %c0_54], %137 {strides = array<i32>} : memref<2x8x32xf32, #tpu.memory_space<vmem>>, vector<2x8x32xf32>,
    return
  }
  func.func @transform_0(%arg0: i32) -> (i32, i32, i32) {
    %c0_i32 = arith.constant 0 : i32
    %c0_i32_0 = arith.constant 0 : i32
    %c0_i32_1 = arith.constant 0 : i32
    return %arg0, %c0_i32, %c0_i32_0 : i32, i32, i32
  }
  func.func @transform_1(%arg0: i32) -> (i32, i32) {
    %c0_i32 = arith.constant 0 : i32
    %c0_i32_0 = arith.constant 0 : i32
    %c0_i32_1 = arith.constant 0 : i32
    return %c0_i32, %c0_i32_0 : i32, i32
  }
  func.func @transform_2(%arg0: i32) -> (i32, i32) {
    %c0_i32 = arith.constant 0 : i32
    %c0_i32_0 = arith.constant 0 : i32
    %c0_i32_1 = arith.constant 0 : i32
    return %c0_i32, %c0_i32_0 : i32, i32
  }
  func.func @transform_3(%arg0: i32) -> (i32, i32) {
    %c0_i32 = arith.constant 0 : i32
    %c0_i32_0 = arith.constant 0 : i32
    %c0_i32_1 = arith.constant 0 : i32
    return %c0_i32, %c0_i32_0 : i32, i32
  }
  func.func @transform_4(%arg0: i32) -> (i32, i32) {
    %c0_i32 = arith.constant 0 : i32
    %c0_i32_0 = arith.constant 0 : i32
    %c0_i32_1 = arith.constant 0 : i32
    return %c0_i32, %c0_i32_0 : i32, i32
  }
  func.func @transform_5(%arg0: i32) -> (i32, i32, i32) {
    %c0_i32 = arith.constant 0 : i32
    %c0_i32_0 = arith.constant 0 : i32
    %c0_i32_1 = arith.constant 0 : i32
    return %arg0, %c0_i32, %c0_i32_0 : i32, i32, i32
  }
}

</mosaic_0001>

<llo_original>
// kernel: tpu_custom_call.1
$region0: #{tpu_custom_call.1}
  #allocation0 [shape = 'u32[]', space=smem, size = 0x4, offset = 0x4, fixed_abs, tag = 'smem constant byte address 0x4 - core index']
  #allocation1 [shape = 'u32[144,128]{1,0:T(1,128)}', space=vmem, size = 0x12000, scoped, tag = 'internal scratch']
  %s0 = inlined_call_operand.vmem [shape: f32[2,8,32], index: 0, kind: input, shape index: {}]
  %s1 = inlined_call_operand.vmem [shape: bf16[32,384], index: 1, kind: input, shape index: {}]
  %s2 = inlined_call_operand.vmem [shape: bf16[256,32], index: 2, kind: input, shape index: {}]
  %s3 = inlined_call_operand.vmem [shape: f32[4,32], index: 3, kind: input, shape index: {}]
  %s4 = inlined_call_operand.vmem [shape: f32[208,32], index: 4, kind: input, shape index: {}]
  %s5 = inlined_call_operand.hbm [shape: f32[2,8,32], index: 5, kind: output, shape index: {}]
  %s6 = sld [smem:[#allocation0]]
  $region30: #{tpu_custom_call.1} parent=0
    _
  %s8 = ssub.s32 1, %s6
  %s9 = scalar_select 0, %s8, %s6
  $region1: #{tpu_custom_call.1} parent=0
    #allocation2 [shape = 'u8[8192]{0}', space=vmem, size = 0x2000, scoped, tag = 'output window, operand 0, single buffered']
    #allocation3 [shape = 's32[1]{0}', space=sflag, size = 0x4, scoped, tag = 'scoped memory for tpu_custom_call.1']
    %10 = vsyncpa [#allocation3], 0
    // Predicated region
    $region2: #{tpu_custom_call.1} parent=1 // pred_check
      _
    $region3: #{tpu_custom_call.1} parent=1 // pred_check_branch
      %12 = sbr.rel (0) target = $region5
    $region4: #{tpu_custom_call.1} parent=1 // pred_region
      _
    $region5: #{tpu_custom_call.1} parent=1 // pred_fallthru
      _
    // Predicated region
    $region6: #{tpu_custom_call.1} parent=1 // pred_check
      _
    $region7: #{tpu_custom_call.1} parent=1 // pred_check_branch
      %14 = sbr.rel (0) target = $region9
    $region8: #{tpu_custom_call.1} parent=1 // pred_region
      _
    $region9: #{tpu_custom_call.1} parent=1 // pred_fallthru
      _
    // Predicated region
    $region10: #{tpu_custom_call.1} parent=1 // pred_check
      _
    $region11: #{tpu_custom_call.1} parent=1 // pred_check_branch
      %16 = sbr.rel (0) target = $region13
    $region12: #{tpu_custom_call.1} parent=1 // pred_region
      _
    $region13: #{tpu_custom_call.1} parent=1 // pred_fallthru
      _
    // Predicated region
    $region14: #{tpu_custom_call.1} parent=1 // pred_check
      _
    $region15: #{tpu_custom_call.1} parent=1 // pred_check_branch
      %18 = sbr.rel (0) target = $region17
    $region16: #{tpu_custom_call.1} parent=1 // pred_region
      _
    $region17: #{tpu_custom_call.1} parent=1 // pred_fallthru
      _
    // Predicated region
    $region18: #{tpu_custom_call.1} parent=1 // pred_check
      _
    $region19: #{tpu_custom_call.1} parent=1 // pred_check_branch
      %20 = sbr.rel (0) target = $region21
    $region20: #{tpu_custom_call.1} parent=1 // pred_region
      _
    $region21: #{tpu_custom_call.1} parent=1 // pred_fallthru
      _
    %v22 = vld [vmem:[%s2] sm:$0xf]
    %v23 = vld [vmem:[%s2 + $0x4] sm:$0xf]
    %v24 = vld [vmem:[%s2 + $0x8] sm:$0xf]
    %v25 = vld [vmem:[%s2 + $0xc] sm:$0xf]
    %v26 = vld [vmem:[%s2 + $0x10] sm:$0xf]
    %v27 = vld [vmem:[%s2 + $0x14] sm:$0xf]
    %v28 = vld [vmem:[%s2 + $0x18] sm:$0xf]
    %v29 = vld [vmem:[%s2 + $0x1c] sm:$0xf]
    %v30 = vld [vmem:[%s2 + $0x70] sm:$0xf]
    %v31 = vld [vmem:[%s2 + $0x74] sm:$0xf]
    %v32 = vld [vmem:[%s2 + $0x78] sm:$0xf]
    %v33 = vld [vmem:[%s2 + $0x7c] sm:$0xf]
    %v34 = vld [vmem:[%s3] sm:$0x1]
    %v35 = vld [vmem:[%s3 + $0x1] sm:$0x1]
    %v36 = vld [vmem:[%s3 + $0x2] sm:$0x1]
    %v37 = vld [vmem:[%s3 + $0x3] sm:$0x1]
    %v38 = vld [vmem:[%s4] sm:$0xff]
    %v39 = vld [vmem:[%s4 + $0x8] sm:$0xff]
    %v40 = vld [vmem:[%s4 + $0x10] sm:$0xff]
    %v41 = vld [vmem:[%s4 + $0x18] sm:$0xff]
    %v42 = vld [vmem:[%s4 + $0x20] sm:$0xff]
    %v43 = vld [vmem:[%s4 + $0x28] sm:$0xff]
    %v44 = vld [vmem:[%s4 + $0x30] sm:$0xff]
    %v45 = vld [vmem:[%s4 + $0x38] sm:$0xff]
    %v46 = vld [vmem:[%s0] sm:$0xff]
    %v47 = vld [vmem:[%s0 + $0x8] sm:$0xff]
    %v48 = vpack.c.bf16 %v47, %v46
    %v49 = vld [vmem:[%s1] sm:$0xff]
    %v50 = vld [vmem:[%s1 + $0x8] sm:$0xf]
    %v51 = vld [vmem:[%s1 + $0xc] sm:$0xff]
    %v52 = vld [vmem:[%s1 + $0x14] sm:$0xf]
    %v53 = vld [vmem:[%s1 + $0x18] sm:$0xff]
    %v54 = vld [vmem:[%s1 + $0x20] sm:$0xf]
    %v55 = vld [vmem:[%s1 + $0x24] sm:$0xff]
    %v56 = vld [vmem:[%s1 + $0x2c] sm:$0xf]
    %v65 = vunpack.c.l.b16 %v49
    %v66 = vunpack.c.h.b16 %v49
    %v67 = vunpack.c.l.b16 %v50
    %v68 = vunpack.c.l.b16 %v51
    %v69 = vunpack.c.h.b16 %v51
    %v70 = vunpack.c.l.b16 %v52
    %v71 = vunpack.c.l.b16 %v53
    %v72 = vunpack.c.h.b16 %v53
    %v73 = vunpack.c.l.b16 %v54
    %v74 = vunpack.c.l.b16 %v55
    %v75 = vunpack.c.h.b16 %v55
    %v76 = vunpack.c.l.b16 %v56
    %v77 = vpack.c.b16 %v68, %v65
    %v78 = vpack.c.b16 %v69, %v66
    %v79 = vpack.c.b16 %v70, %v67
    %v80 = vpack.c.b16 %v74, %v71
    %v81 = vpack.c.b16 %v75, %v72
    %v82 = vpack.c.b16 %v76, %v73
    %vm89 = vcmask 261120
    %v91 = vsel %vm89, %v48, 0
    %93 = vmatprep.subr.bf16.mxu0 %v78
    %94 = vmatpush1.bf16.msra.mxu0 %v77
    %95 = vmatprep.subr.bf16.mxu0 %v81
    %96 = vmatpush1.bf16.msra.mxu0 %v80
    %97 = vmatprep.subr.bf16.mxu0 0
    %98 = vmatpush1.bf16.msra.mxu0 0
    %99 = vmatprep.subr.bf16.mxu0 0
    %100 = vmatpush1.bf16.msra.mxu0 0
    %101 = vmatprep.subr.bf16.mxu0 0
    %102 = vmatpush1.bf16.msra.mxu0 0
    %103 = vmatprep.subr.bf16.mxu0 0
    %104 = vmatpush1.bf16.msra.mxu0 0
    %105 = vmatprep.subr.bf16.mxu0 0
    %106 = vmatpush1.bf16.msra.mxu0 0
    %107 = vmatprep.subr.bf16.mxu0 0
    %108 = vmatpush1.bf16.msra.mxu0 0
    %109 = vmatprep.subr.bf16.mxu0 0
    %110 = vmatpush1.bf16.msra.mxu0 0
    %111 = vmatprep.subr.bf16.mxu0 0
    %112 = vmatpush1.bf16.msra.mxu0 0
    %113 = vmatprep.subr.bf16.mxu0 0
    %114 = vmatpush1.bf16.msra.mxu0 0
    %115 = vmatprep.subr.bf16.mxu0 0
    %116 = vmatpush1.bf16.msra.mxu0 0
    %117 = vmatprep.subr.bf16.mxu0 0
    %118 = vmatpush1.bf16.msra.mxu0 0
    %119 = vmatprep.subr.bf16.mxu0 0
    %120 = vmatpush1.bf16.msra.mxu0 0
    %121 = vmatprep.subr.bf16.mxu0 0
    %122 = vmatpush1.bf16.msra.mxu0 0
    %123 = vmatprep.subr.bf16.mxu0 0
    %124 = vmatpush1.bf16.msra.mxu0 0
    %125 = vmatprep.mubr.bf16.mxu0 0
    %126 = vmatmul.mubr.bf16.gmra.mrb[0].mxu0 %v91
    %v127 = vpop.f32.mrb[0].mxu0
    %v128 = vadd.f32 0.0, %v127
    %v129 = vpop.f32.mrb[0].mxu0
    %v130 = vadd.f32 0.0, %v129
    %v131 = vpop.f32.mrb[0].mxu0
    %v132 = vadd.f32 0.0, %v131
    %v133 = vpop.f32.mrb[0].mxu0
    %v134 = vadd.f32 0.0, %v133
    %135 = vdwg.mxu0
    %136 = vmatprep.subr.bf16.mxu0 0
    %137 = vmatpush1.bf16.msra.mxu0 %v79
    %138 = vmatprep.subr.bf16.mxu0 0
    %139 = vmatpush1.bf16.msra.mxu0 %v82
    %140 = vmatprep.subr.bf16.mxu0 0
    %141 = vmatpush1.bf16.msra.mxu0 0
    %142 = vmatprep.subr.bf16.mxu0 0
    %143 = vmatpush1.bf16.msra.mxu0 0
    %144 = vmatprep.subr.bf16.mxu0 0
    %145 = vmatpush1.bf16.msra.mxu0 0
    %146 = vmatprep.subr.bf16.mxu0 0
    %147 = vmatpush1.bf16.msra.mxu0 0
    %148 = vmatprep.subr.bf16.mxu0 0
    %149 = vmatpush1.bf16.msra.mxu0 0
    %150 = vmatprep.subr.bf16.mxu0 0
    %151 = vmatpush1.bf16.msra.mxu0 0
    %152 = vmatprep.subr.bf16.mxu0 0
    %153 = vmatpush1.bf16.msra.mxu0 0
    %154 = vmatprep.subr.bf16.mxu0 0
    %155 = vmatpush1.bf16.msra.mxu0 0
    %156 = vmatprep.subr.bf16.mxu0 0
    %157 = vmatpush1.bf16.msra.mxu0 0
    %158 = vmatprep.subr.bf16.mxu0 0
    %159 = vmatpush1.bf16.msra.mxu0 0
    %160 = vmatprep.subr.bf16.mxu0 0
    %161 = vmatpush1.bf16.msra.mxu0 0
    %162 = vmatprep.subr.bf16.mxu0 0
    %163 = vmatpush1.bf16.msra.mxu0 0
    %164 = vmatprep.subr.bf16.mxu0 0
    %165 = vmatpush1.bf16.msra.mxu0 0
    %166 = vmatprep.subr.bf16.mxu0 0
    %167 = vmatpush1.bf16.msra.mxu0 0
    %168 = vmatprep.mubr.bf16.mxu0 0
    %169 = vmatmul.mubr.bf16.gmra.mrb[0].mxu0 %v91
    %v170 = vpop.f32.mrb[0].mxu0
    %v171 = vadd.f32 0.0, %v170
    %v172 = vpop.f32.mrb[0].mxu0
    %v173 = vpop.f32.mrb[0].mxu0
    %v174 = vadd.f32 0.0, %v173
    %v175 = vpop.f32.mrb[0].mxu0
    %176 = vdwg.mxu0
    %v177 = vmul.f32 %v128, %v38
    %v178 = vmul.f32 %v132, %v39
    %v179 = vmul.f32 %v128, %v40
    %v180 = vmul.f32 %v132, %v41
    %v181 = vmul.f32 %v128, %v42
    %v182 = vmul.f32 %v132, %v43
    %v183 = vmul.f32 %v128, %v44
    %v184 = vmul.f32 %v132, %v45
    %v185 = vpack.c.bf16 %v178, %v177
    %v186 = vpack.c.bf16 %v180, %v179
    %v187 = vpack.c.bf16 %v182, %v181
    %v188 = vpack.c.bf16 %v184, %v183
    %v189 = vpack.c.bf16 %v134, %v130
    %v190 = vld [vmem:[%s4 + $0x90] sm:$0xff]
    %v191 = vld [vmem:[%s4 + $0x98] sm:$0xff]
    %v192 = vld [vmem:[%s4 + $0xa0] sm:$0xff]
    %v193 = vld [vmem:[%s4 + $0xa8] sm:$0xff]
    %v194 = vld [vmem:[%s4 + $0xb0] sm:$0xff]
    %v195 = vld [vmem:[%s4 + $0xb8] sm:$0xff]
    %v196 = vld [vmem:[%s4 + $0xc0] sm:$0xff]
    %v197 = vld [vmem:[%s4 + $0xc8] sm:$0xff]
    %v199 = vsel %vm89, %v185, 0
    %v202 = vsel %vm89, %v186, 0
    %v205 = vsel %vm89, %v187, 0
    %v208 = vsel %vm89, %v188, 0
    %v211 = vsel %vm89, %v189, 0
    %213 = vmatprep.subr.bf16.mxu0 0
    %214 = vmatpush1.bf16.xpose.msra.mxu0 %v211
    %215 = vmatprep.subr.bf16.mxu0 0
    %216 = vmatpush1.bf16.xpose.msra.mxu0 0
    %217 = vmatprep.subr.bf16.mxu0 0
    %218 = vmatpush1.bf16.xpose.msra.mxu0 0
    %219 = vmatprep.subr.bf16.mxu0 0
    %220 = vmatpush1.bf16.xpose.msra.mxu0 0
    %221 = vmatprep.subr.bf16.mxu0 0
    %222 = vmatpush1.bf16.xpose.msra.mxu0 0
    %223 = vmatprep.subr.bf16.mxu0 0
    %224 = vmatpush1.bf16.xpose.msra.mxu0 0
    %225 = vmatprep.subr.bf16.mxu0 0
    %226 = vmatpush1.bf16.xpose.msra.mxu0 0
    %227 = vmatprep.subr.bf16.mxu0 0
    %228 = vmatpush1.bf16.xpose.msra.mxu0 0
    %229 = vmatprep.subr.bf16.mxu0 0
    %230 = vmatpush1.bf16.xpose.msra.mxu0 0
    %231 = vmatprep.subr.bf16.mxu0 0
    %232 = vmatpush1.bf16.xpose.msra.mxu0 0
    %233 = vmatprep.subr.bf16.mxu0 0
    %234 = vmatpush1.bf16.xpose.msra.mxu0 0
    %235 = vmatprep.subr.bf16.mxu0 0
    %236 = vmatpush1.bf16.xpose.msra.mxu0 0
    %237 = vmatprep.subr.bf16.mxu0 0
    %238 = vmatpush1.bf16.xpose.msra.mxu0 0
    %239 = vmatprep.subr.bf16.mxu0 0
    %240 = vmatpush1.bf16.xpose.msra.mxu0 0
    %241 = vmatprep.subr.bf16.mxu0 0
    %242 = vmatpush1.bf16.xpose.msra.mxu0 0
    %243 = vmatprep.subr.bf16.mxu0 0
    %244 = vmatpush1.bf16.xpose.msra.mxu0 0
    %245 = vmatprep.mubr.bf16.mxu0 0
    %246 = vmatmul.mubr.bf16.gmra.mrb[0].mxu0 %v199
    %v247 = vpop.f32.mrb[0].mxu0
    %v248 = vadd.f32 %v190, %v247
    %v249 = vpop.f32.mrb[0].mxu0
    %v250 = vpop.f32.mrb[0].mxu0
    %v251 = vadd.f32 %v191, %v250
    %v252 = vpop.f32.mrb[0].mxu0
    %253 = vmatprep.mubr.bf16.mxu0 0
    %254 = vmatmul.mubr.bf16.gmra.mrb[0].mxu0 %v202
    %v255 = vpop.f32.mrb[0].mxu0
    %v256 = vadd.f32 %v192, %v255
    %v257 = vpop.f32.mrb[0].mxu0
    %v258 = vpop.f32.mrb[0].mxu0
    %v259 = vadd.f32 %v193, %v258
    %v260 = vpop.f32.mrb[0].mxu0
    %261 = vmatprep.mubr.bf16.mxu0 0
    %262 = vmatmul.mubr.bf16.gmra.mrb[0].mxu0 %v205
    %v263 = vpop.f32.mrb[0].mxu0
    %v264 = vadd.f32 %v194, %v263
    %v265 = vpop.f32.mrb[0].mxu0
    %v266 = vpop.f32.mrb[0].mxu0
    %v267 = vadd.f32 %v195, %v266
    %v268 = vpop.f32.mrb[0].mxu0
    %269 = vmatprep.mubr.bf16.mxu0 0
    %270 = vmatmul.mubr.bf16.gmra.mrb[0].mxu0 %v208
    %v271 = vpop.f32.mrb[0].mxu0
    %v272 = vadd.f32 %v196, %v271
    %v273 = vpop.f32.mrb[0].mxu0
    %v274 = vpop.f32.mrb[0].mxu0
    %v275 = vadd.f32 %v197, %v274
    %v276 = vpop.f32.mrb[0].mxu0
    %277 = vdwg.mxu0
    %vm278 = vcmask 130048
    %v279 = vsel %vm278, %v248, -inf
    %280 = vmax.xlane.f32.xlu0 %v279
    %v281 = vpop.xlane.xlu0 %280
    %v282 = vsel %vm278, %v251, -inf
    %283 = vmax.xlane.f32.xlu0 %v282
    %v284 = vpop.xlane.xlu0 %283
    %v285 = vsel %vm278, %v256, -inf
    %286 = vmax.xlane.f32.xlu0 %v285
    %v287 = vpop.xlane.xlu0 %286
    %v288 = vsel %vm278, %v259, -inf
    %289 = vmax.xlane.f32.xlu0 %v288
    %v290 = vpop.xlane.xlu0 %289
    %v291 = vsel %vm278, %v264, -inf
    %292 = vmax.xlane.f32.xlu0 %v291
    %v293 = vpop.xlane.xlu0 %292
    %v294 = vsel %vm278, %v267, -inf
    %295 = vmax.xlane.f32.xlu0 %v294
    %v296 = vpop.xlane.xlu0 %295
    %v297 = vsel %vm278, %v272, -inf
    %298 = vmax.xlane.f32.xlu0 %v297
    %v299 = vpop.xlane.xlu0 %298
    %v300 = vsel %vm278, %v275, -inf
    %301 = vmax.xlane.f32.xlu0 %v300
    %v302 = vpop.xlane.xlu0 %301
    %v303 = vsub.f32 %v248, %v281
    %v304 = vsub.f32 %v251, %v284
    %v305 = vsub.f32 %v256, %v287
    %v306 = vsub.f32 %v259, %v290
    %v307 = vsub.f32 %v264, %v293
    %v308 = vsub.f32 %v267, %v296
    %v309 = vsub.f32 %v272, %v299
    %v310 = vsub.f32 %v275, %v302
    %v311 = vmul.f32 %v303, 1.442695
    %v312 = vpow.pop %v311
    %v313 = vmul.f32 %v304, 1.442695
    %v314 = vpow.pop %v313
    %v315 = vmul.f32 %v305, 1.442695
    %v316 = vpow.pop %v315
    %v317 = vmul.f32 %v306, 1.442695
    %v318 = vpow.pop %v317
    %v319 = vmul.f32 %v307, 1.442695
    %v320 = vpow.pop %v319
    %v321 = vmul.f32 %v308, 1.442695
    %v322 = vpow.pop %v321
    %v323 = vmul.f32 %v309, 1.442695
    %v324 = vpow.pop %v323
    %v325 = vmul.f32 %v310, 1.442695
    %v326 = vpow.pop %v325
    %v327 = vsel %vm278, %v312, 0.0
    %328 = vadd.xlane.f32.xlu0 %v327
    %v329 = vpop.xlane.xlu0 %328
    %v330 = vsel %vm278, %v314, 0.0
    %331 = vadd.xlane.f32.xlu0 %v330
    %v332 = vpop.xlane.xlu0 %331
    %v333 = vsel %vm278, %v316, 0.0
    %334 = vadd.xlane.f32.xlu0 %v333
    %v335 = vpop.xlane.xlu0 %334
    %v336 = vsel %vm278, %v318, 0.0
    %337 = vadd.xlane.f32.xlu0 %v336
    %v338 = vpop.xlane.xlu0 %337
    %v339 = vsel %vm278, %v320, 0.0
    %340 = vadd.xlane.f32.xlu0 %v339
    %v341 = vpop.xlane.xlu0 %340
    %v342 = vsel %vm278, %v322, 0.0
    %343 = vadd.xlane.f32.xlu0 %v342
    %v344 = vpop.xlane.xlu0 %343
    %v345 = vsel %vm278, %v324, 0.0
    %346 = vadd.xlane.f32.xlu0 %v345
    %v347 = vpop.xlane.xlu0 %346
    %v348 = vsel %vm278, %v326, 0.0
    %349 = vadd.xlane.f32.xlu0 %v348
    %v350 = vpop.xlane.xlu0 %349
    %v351 = vrcp.pop %v329
    %v352 = vrcp.pop %v332
    %v353 = vrcp.pop %v335
    %v354 = vrcp.pop %v338
    %v355 = vrcp.pop %v341
    %v356 = vrcp.pop %v344
    %v357 = vrcp.pop %v347
    %v358 = vrcp.pop %v350
    %v359 = vmul.f32 %v312, %v351
    %v360 = vmul.f32 %v314, %v352
    %v361 = vmul.f32 %v316, %v353
    %v362 = vmul.f32 %v318, %v354
    %v363 = vmul.f32 %v320, %v355
    %v364 = vmul.f32 %v322, %v356
    %v365 = vmul.f32 %v324, %v357
    %v366 = vmul.f32 %v326, %v358
    %v367 = vpack.c.bf16 %v360, %v359
    %v368 = vpack.c.bf16 %v362, %v361
    %v369 = vpack.c.bf16 %v364, %v363
    %v370 = vpack.c.bf16 %v366, %v365
    %v371 = vpack.c.bf16 %v174, %v171
    %v373 = vsel %vm278, %v367, 0
    %v376 = vsel %vm278, %v368, 0
    %v379 = vsel %vm278, %v369, 0
    %v382 = vsel %vm278, %v370, 0
    %384 = vmatprep.subr.bf16.mxu0 0
    %385 = vmatpush1.bf16.msra.mxu0 %v371
    %386 = vmatprep.subr.bf16.mxu0 0
    %387 = vmatpush1.bf16.msra.mxu0 0
    %388 = vmatprep.subr.bf16.mxu0 0
    %389 = vmatpush1.bf16.msra.mxu0 0
    %390 = vmatprep.subr.bf16.mxu0 0
    %391 = vmatpush1.bf16.msra.mxu0 0
    %392 = vmatprep.subr.bf16.mxu0 0
    %393 = vmatpush1.bf16.msra.mxu0 0
    %394 = vmatprep.subr.bf16.mxu0 0
    %395 = vmatpush1.bf16.msra.mxu0 0
    %396 = vmatprep.subr.bf16.mxu0 0
    %397 = vmatpush1.bf16.msra.mxu0 0
    %398 = vmatprep.subr.bf16.mxu0 0
    %399 = vmatpush1.bf16.msra.mxu0 0
    %400 = vmatprep.subr.bf16.mxu0 0
    %401 = vmatpush1.bf16.msra.mxu0 0
    %402 = vmatprep.subr.bf16.mxu0 0
    %403 = vmatpush1.bf16.msra.mxu0 0
    %404 = vmatprep.subr.bf16.mxu0 0
    %405 = vmatpush1.bf16.msra.mxu0 0
    %406 = vmatprep.subr.bf16.mxu0 0
    %407 = vmatpush1.bf16.msra.mxu0 0
    %408 = vmatprep.subr.bf16.mxu0 0
    %409 = vmatpush1.bf16.msra.mxu0 0
    %410 = vmatprep.subr.bf16.mxu0 0
    %411 = vmatpush1.bf16.msra.mxu0 0
    %412 = vmatprep.subr.bf16.mxu0 0
    %413 = vmatpush1.bf16.msra.mxu0 0
    %414 = vmatprep.subr.bf16.mxu0 0
    %415 = vmatpush1.bf16.msra.mxu0 0
    %416 = vmatprep.mubr.bf16.mxu0 0
    %417 = vmatmul.mubr.bf16.gmra.mrb[0].mxu0 %v373
    %v418 = vpop.f32.mrb[0].mxu0
    %v419 = vadd.f32 0.0, %v418
    %v420 = vpop.f32.mrb[0].mxu0
    %v421 = vpop.f32.mrb[0].mxu0
    %v422 = vadd.f32 0.0, %v421
    %v423 = vpop.f32.mrb[0].mxu0
    %424 = vmatprep.mubr.bf16.mxu0 0
    %425 = vmatmul.mubr.bf16.gmra.mrb[0].mxu0 %v376
    %v426 = vpop.f32.mrb[0].mxu0
    %v427 = vadd.f32 0.0, %v426
    %v428 = vpop.f32.mrb[0].mxu0
    %v429 = vpop.f32.mrb[0].mxu0
    %v430 = vadd.f32 0.0, %v429
    %v431 = vpop.f32.mrb[0].mxu0
    %432 = vmatprep.mubr.bf16.mxu0 0
    %433 = vmatmul.mubr.bf16.gmra.mrb[0].mxu0 %v379
    %v434 = vpop.f32.mrb[0].mxu0
    %v435 = vadd.f32 0.0, %v434
    %v436 = vpop.f32.mrb[0].mxu0
    %v437 = vpop.f32.mrb[0].mxu0
    %v438 = vadd.f32 0.0, %v437
    %v439 = vpop.f32.mrb[0].mxu0
    %440 = vmatprep.mubr.bf16.mxu0 0
    %441 = vmatmul.mubr.bf16.gmra.mrb[0].mxu0 %v382
    %v442 = vpop.f32.mrb[0].mxu0
    %v443 = vadd.f32 0.0, %v442
    %v444 = vpop.f32.mrb[0].mxu0
    %v445 = vpop.f32.mrb[0].mxu0
    %v446 = vadd.f32 0.0, %v445
    %v447 = vpop.f32.mrb[0].mxu0
    %448 = vdwg.mxu0
    %v449 = vmul.f32 %v419, %v38
    %v450 = vmul.f32 %v422, %v39
    %v451 = vmul.f32 %v427, %v40
    %v452 = vmul.f32 %v430, %v41
    %v453 = vmul.f32 %v435, %v42
    %v454 = vmul.f32 %v438, %v43
    %v455 = vmul.f32 %v443, %v44
    %v456 = vmul.f32 %v446, %v45
    %v457 = vadd.f32 %v449, %v451
    %v458 = vadd.f32 %v450, %v452
    %v459 = vadd.f32 %v457, %v453
    %v460 = vadd.f32 %v458, %v454
    %v461 = vadd.f32 %v459, %v455
    %v462 = vadd.f32 %v460, %v456
    %v463 = vpack.c.bf16 %v462, %v461
    %v468 = vunpack.c.l.b16 %v22
    %v469 = vunpack.c.l.b16 %v23
    %v470 = vunpack.c.l.b16 %v24
    %v471 = vunpack.c.l.b16 %v25
    %v472 = vpack.c.b16 %v469, %v468
    %v473 = vpack.c.b16 %v471, %v470
    %v477 = vsel %vm89, %v463, 0
    %479 = vmatprep.subr.bf16.mxu0 0
    %480 = vmatpush1.bf16.msra.mxu0 %v472
    %481 = vmatprep.subr.bf16.mxu0 0
    %482 = vmatpush1.bf16.msra.mxu0 %v473
    %483 = vmatprep.subr.bf16.mxu0 0
    %484 = vmatpush1.bf16.msra.mxu0 0
    %485 = vmatprep.subr.bf16.mxu0 0
    %486 = vmatpush1.bf16.msra.mxu0 0
    %487 = vmatprep.subr.bf16.mxu0 0
    %488 = vmatpush1.bf16.msra.mxu0 0
    %489 = vmatprep.subr.bf16.mxu0 0
    %490 = vmatpush1.bf16.msra.mxu0 0
    %491 = vmatprep.subr.bf16.mxu0 0
    %492 = vmatpush1.bf16.msra.mxu0 0
    %493 = vmatprep.subr.bf16.mxu0 0
    %494 = vmatpush1.bf16.msra.mxu0 0
    %495 = vmatprep.subr.bf16.mxu0 0
    %496 = vmatpush1.bf16.msra.mxu0 0
    %497 = vmatprep.subr.bf16.mxu0 0
    %498 = vmatpush1.bf16.msra.mxu0 0
    %499 = vmatprep.subr.bf16.mxu0 0
    %500 = vmatpush1.bf16.msra.mxu0 0
    %501 = vmatprep.subr.bf16.mxu0 0
    %502 = vmatpush1.bf16.msra.mxu0 0
    %503 = vmatprep.subr.bf16.mxu0 0
    %504 = vmatpush1.bf16.msra.mxu0 0
    %505 = vmatprep.subr.bf16.mxu0 0
    %506 = vmatpush1.bf16.msra.mxu0 0
    %507 = vmatprep.subr.bf16.mxu0 0
    %508 = vmatpush1.bf16.msra.mxu0 0
    %509 = vmatprep.subr.bf16.mxu0 0
    %510 = vmatpush1.bf16.msra.mxu0 0
    %511 = vmatprep.mubr.bf16.mxu0 0
    %512 = vmatmul.mubr.bf16.gmra.mrb[0].mxu0 %v477
    %v513 = vpop.f32.mrb[0].mxu0
    %v514 = vadd.f32 %v46, %v513
    %v515 = vpop.f32.mrb[0].mxu0
    %v516 = vpop.f32.mrb[0].mxu0
    %v517 = vadd.f32 %v47, %v516
    %v518 = vpop.f32.mrb[0].mxu0
    %519 = vdwg.mxu0
    %v520 = vsel %vm89, %v514, 0.0
    %521 = vadd.xlane.f32.xlu0 %v520
    %v522 = vpop.xlane.xlu0 %521
    %v523 = vsel %vm89, %v517, 0.0
    %524 = vadd.xlane.f32.xlu0 %v523
    %v525 = vpop.xlane.xlu0 %524
    %v526 = vrcp.pop 32.0
    %v527 = vmul.f32 %v522, %v526
    %v528 = vmul.f32 %v525, %v526
    %v529 = vsub.f32 %v514, %v527
    %v530 = vsub.f32 %v517, %v528
    %v531 = vmul.f32 %v529, %v529
    %v532 = vmul.f32 %v530, %v530
    %v533 = vsel %vm89, %v531, 0.0
    %534 = vadd.xlane.f32.xlu0 %v533
    %v535 = vpop.xlane.xlu0 %534
    %v536 = vsel %vm89, %v532, 0.0
    %537 = vadd.xlane.f32.xlu0 %v536
    %v538 = vpop.xlane.xlu0 %537
    %v539 = vmul.f32 %v535, %v526
    %v540 = vmul.f32 %v538, %v526
    %v541 = vadd.f32 %v539, 1e-05
    %v542 = vadd.f32 %v540, 1e-05
    %v543 = vrsqrt.pop %v541
    %v544 = vrsqrt.pop %v542
    %v545 = vmul.f32 %v529, %v543
    %v546 = vmul.f32 %v530, %v544
    %v547 = vlaneseq
    %v548 = vshrl.u32 %v547, 7
    %v549 = vsub.s32 0, %v548
    %v550 = vrot.slane %v34, %v549
    %v551 = vmul.f32 %v545, %v550
    %v552 = vmul.f32 %v546, %v550
    %v553 = vlaneseq
    %v554 = vshrl.u32 %v553, 7
    %v555 = vsub.s32 0, %v554
    %v556 = vrot.slane %v35, %v555
    %v557 = vadd.f32 %v551, %v556
    %v558 = vadd.f32 %v552, %v556
    %v559 = vmax.f32 %v557, 0.0
    %v560 = vmax.f32 %v558, 0.0
    %v561 = vpack.c.bf16 %v560, %v559
    %v566 = vunpack.c.l.b16 %v26
    %v567 = vunpack.c.l.b16 %v27
    %v568 = vunpack.c.l.b16 %v28
    %v569 = vunpack.c.l.b16 %v29
    %v570 = vpack.c.b16 %v567, %v566
    %v571 = vpack.c.b16 %v569, %v568
    %v575 = vsel %vm89, %v561, 0
    %577 = vmatprep.subr.bf16.mxu0 0
    %578 = vmatpush1.bf16.msra.mxu0 %v570
    %579 = vmatprep.subr.bf16.mxu0 0
    %580 = vmatpush1.bf16.msra.mxu0 %v571
    %581 = vmatprep.subr.bf16.mxu0 0
    %582 = vmatpush1.bf16.msra.mxu0 0
    %583 = vmatprep.subr.bf16.mxu0 0
    %584 = vmatpush1.bf16.msra.mxu0 0
    %585 = vmatprep.subr.bf16.mxu0 0
    %586 = vmatpush1.bf16.msra.mxu0 0
    %587 = vmatprep.subr.bf16.mxu0 0
    %588 = vmatpush1.bf16.msra.mxu0 0
    %589 = vmatprep.subr.bf16.mxu0 0
    %590 = vmatpush1.bf16.msra.mxu0 0
    %591 = vmatprep.subr.bf16.mxu0 0
    %592 = vmatpush1.bf16.msra.mxu0 0
    %593 = vmatprep.subr.bf16.mxu0 0
    %594 = vmatpush1.bf16.msra.mxu0 0
    %595 = vmatprep.subr.bf16.mxu0 0
    %596 = vmatpush1.bf16.msra.mxu0 0
    %597 = vmatprep.subr.bf16.mxu0 0
    %598 = vmatpush1.bf16.msra.mxu0 0
    %599 = vmatprep.subr.bf16.mxu0 0
    %600 = vmatpush1.bf16.msra.mxu0 0
    %601 = vmatprep.subr.bf16.mxu0 0
    %602 = vmatpush1.bf16.msra.mxu0 0
    %603 = vmatprep.subr.bf16.mxu0 0
    %604 = vmatpush1.bf16.msra.mxu0 0
    %605 = vmatprep.subr.bf16.mxu0 0
    %606 = vmatpush1.bf16.msra.mxu0 0
    %607 = vmatprep.subr.bf16.mxu0 0
    %608 = vmatpush1.bf16.msra.mxu0 0
    %609 = vmatprep.mubr.bf16.mxu0 0
    %610 = vmatmul.mubr.bf16.gmra.mrb[0].mxu0 %v575
    %v611 = vpop.f32.mrb[0].mxu0
    %v612 = vadd.f32 0.0, %v611
    %v613 = vpop.f32.mrb[0].mxu0
    %v614 = vpop.f32.mrb[0].mxu0
    %v615 = vadd.f32 0.0, %v614
    %v616 = vpop.f32.mrb[0].mxu0
    %617 = vdwg.mxu0
    %v618 = vmax.f32 %v612, 0.0
    %v619 = vmax.f32 %v615, 0.0
    %v620 = vrot.slane %v618, 6
    %v621 = vrot.slane %v619, 6
    %v622 = vlaneseq
    %v623 = vshrl.u32 %v622, 7
    %vm624 = vcmp.lt.s32.totalorder %v623, 2
    %v625 = vsel %vm624, %v620, %v621
    %v626 = vsel %vm624, %v621, %v620
    %v627 = vld [vmem:[%s4 + $0x40] sm:$0xff]
    %v628 = vld [vmem:[%s4 + $0x48] sm:$0xff]
    %v629 = vmul.f32 %v626, %v627
    %v630 = vmul.f32 %v625, %v628
    %v631 = vpack.c.bf16 %v630, %v629
    %v632 = vld [vmem:[%s2 + $0x20] sm:$0xf]
    %v633 = vld [vmem:[%s2 + $0x24] sm:$0xf]
    %v634 = vld [vmem:[%s2 + $0x28] sm:$0xf]
    %v635 = vld [vmem:[%s2 + $0x2c] sm:$0xf]
    %v636 = vrot.slane %v618, 7
    %v637 = vrot.slane %v619, 7
    %vm638 = vcmp.lt.s32.totalorder %v623, 1
    %v639 = vsel %vm638, %v636, %v637
    %v640 = vsel %vm638, %v637, %v636
    %v641 = vld [vmem:[%s4 + $0x50] sm:$0xff]
    %v642 = vld [vmem:[%s4 + $0x58] sm:$0xff]
    %v643 = vmul.f32 %v640, %v641
    %v644 = vmul.f32 %v639, %v642
    %v645 = vpack.c.bf16 %v644, %v643
    %v646 = vld [vmem:[%s2 + $0x30] sm:$0xf]
    %v647 = vld [vmem:[%s2 + $0x34] sm:$0xf]
    %v648 = vld [vmem:[%s2 + $0x38] sm:$0xf]
    %v649 = vld [vmem:[%s2 + $0x3c] sm:$0xf]
    %v654 = vunpack.c.l.b16 %v646
    %v655 = vunpack.c.l.b16 %v647
    %v656 = vunpack.c.l.b16 %v648
    %v657 = vunpack.c.l.b16 %v649
    %v658 = vpack.c.b16 %v655, %v654
    %v659 = vpack.c.b16 %v657, %v656
    %v663 = vsel %vm89, %v645, 0
    %665 = vmatprep.subr.bf16.mxu0 0
    %666 = vmatpush1.bf16.msra.mxu0 %v658
    %667 = vmatprep.subr.bf16.mxu0 0
    %668 = vmatpush1.bf16.msra.mxu0 %v659
    %669 = vmatprep.subr.bf16.mxu0 0
    %670 = vmatpush1.bf16.msra.mxu0 0
    %671 = vmatprep.subr.bf16.mxu0 0
    %672 = vmatpush1.bf16.msra.mxu0 0
    %673 = vmatprep.subr.bf16.mxu0 0
    %674 = vmatpush1.bf16.msra.mxu0 0
    %675 = vmatprep.subr.bf16.mxu0 0
    %676 = vmatpush1.bf16.msra.mxu0 0
    %677 = vmatprep.subr.bf16.mxu0 0
    %678 = vmatpush1.bf16.msra.mxu0 0
    %679 = vmatprep.subr.bf16.mxu0 0
    %680 = vmatpush1.bf16.msra.mxu0 0
    %681 = vmatprep.subr.bf16.mxu0 0
    %682 = vmatpush1.bf16.msra.mxu0 0
    %683 = vmatprep.subr.bf16.mxu0 0
    %684 = vmatpush1.bf16.msra.mxu0 0
    %685 = vmatprep.subr.bf16.mxu0 0
    %686 = vmatpush1.bf16.msra.mxu0 0
    %687 = vmatprep.subr.bf16.mxu0 0
    %688 = vmatpush1.bf16.msra.mxu0 0
    %689 = vmatprep.subr.bf16.mxu0 0
    %690 = vmatpush1.bf16.msra.mxu0 0
    %691 = vmatprep.subr.bf16.mxu0 0
    %692 = vmatpush1.bf16.msra.mxu0 0
    %693 = vmatprep.subr.bf16.mxu0 0
    %694 = vmatpush1.bf16.msra.mxu0 0
    %695 = vmatprep.subr.bf16.mxu0 0
    %696 = vmatpush1.bf16.msra.mxu0 0
    %697 = vmatprep.mubr.bf16.mxu0 0
    %698 = vmatmul.mubr.bf16.gmra.mrb[0].mxu0 %v663
    %v699 = vpop.f32.mrb[0].mxu0
    %v700 = vadd.f32 0.0, %v699
    %v701 = vpop.f32.mrb[0].mxu0
    %v702 = vpop.f32.mrb[0].mxu0
    %v703 = vadd.f32 0.0, %v702
    %v704 = vpop.f32.mrb[0].mxu0
    %705 = vdwg.mxu0
    %v710 = vunpack.c.l.b16 %v632
    %v711 = vunpack.c.l.b16 %v633
    %v712 = vunpack.c.l.b16 %v634
    %v713 = vunpack.c.l.b16 %v635
    %v714 = vpack.c.b16 %v711, %v710
    %v715 = vpack.c.b16 %v713, %v712
    %v719 = vsel %vm89, %v631, 0
    %721 = vmatprep.subr.bf16.mxu0 0
    %722 = vmatpush1.bf16.msra.mxu0 %v714
    %723 = vmatprep.subr.bf16.mxu0 0
    %724 = vmatpush1.bf16.msra.mxu0 %v715
    %725 = vmatprep.subr.bf16.mxu0 0
    %726 = vmatpush1.bf16.msra.mxu0 0
    %727 = vmatprep.subr.bf16.mxu0 0
    %728 = vmatpush1.bf16.msra.mxu0 0
    %729 = vmatprep.subr.bf16.mxu0 0
    %730 = vmatpush1.bf16.msra.mxu0 0
    %731 = vmatprep.subr.bf16.mxu0 0
    %732 = vmatpush1.bf16.msra.mxu0 0
    %733 = vmatprep.subr.bf16.mxu0 0
    %734 = vmatpush1.bf16.msra.mxu0 0
    %735 = vmatprep.subr.bf16.mxu0 0
    %736 = vmatpush1.bf16.msra.mxu0 0
    %737 = vmatprep.subr.bf16.mxu0 0
    %738 = vmatpush1.bf16.msra.mxu0 0
    %739 = vmatprep.subr.bf16.mxu0 0
    %740 = vmatpush1.bf16.msra.mxu0 0
    %741 = vmatprep.subr.bf16.mxu0 0
    %742 = vmatpush1.bf16.msra.mxu0 0
    %743 = vmatprep.subr.bf16.mxu0 0
    %744 = vmatpush1.bf16.msra.mxu0 0
    %745 = vmatprep.subr.bf16.mxu0 0
    %746 = vmatpush1.bf16.msra.mxu0 0
    %747 = vmatprep.subr.bf16.mxu0 0
    %748 = vmatpush1.bf16.msra.mxu0 0
    %749 = vmatprep.subr.bf16.mxu0 0
    %750 = vmatpush1.bf16.msra.mxu0 0
    %751 = vmatprep.subr.bf16.mxu0 0
    %752 = vmatpush1.bf16.msra.mxu0 0
    %753 = vmatprep.mubr.bf16.mxu0 0
    %754 = vmatmul.mubr.bf16.gmra.mrb[0].mxu0 %v719
    %v755 = vpop.f32.mrb[0].mxu0
    %v756 = vadd.f32 %v700, %v755
    %v757 = vpop.f32.mrb[0].mxu0
    %v758 = vpop.f32.mrb[0].mxu0
    %v759 = vadd.f32 %v703, %v758
    %v760 = vpop.f32.mrb[0].mxu0
    %761 = vdwg.mxu0
    %v762 = vpack.c.bf16 %v619, %v618
    %v763 = vld [vmem:[%s2 + $0x40] sm:$0xf]
    %v764 = vld [vmem:[%s2 + $0x44] sm:$0xf]
    %v765 = vld [vmem:[%s2 + $0x48] sm:$0xf]
    %v766 = vld [vmem:[%s2 + $0x4c] sm:$0xf]
    %v771 = vunpack.c.l.b16 %v763
    %v772 = vunpack.c.l.b16 %v764
    %v773 = vunpack.c.l.b16 %v765
    %v774 = vunpack.c.l.b16 %v766
    %v775 = vpack.c.b16 %v772, %v771
    %v776 = vpack.c.b16 %v774, %v773
    %v780 = vsel %vm89, %v762, 0
    %782 = vmatprep.subr.bf16.mxu0 0
    %783 = vmatpush1.bf16.msra.mxu0 %v775
    %784 = vmatprep.subr.bf16.mxu0 0
    %785 = vmatpush1.bf16.msra.mxu0 %v776
    %786 = vmatprep.subr.bf16.mxu0 0
    %787 = vmatpush1.bf16.msra.mxu0 0
    %788 = vmatprep.subr.bf16.mxu0 0
    %789 = vmatpush1.bf16.msra.mxu0 0
    %790 = vmatprep.subr.bf16.mxu0 0
    %791 = vmatpush1.bf16.msra.mxu0 0
    %792 = vmatprep.subr.bf16.mxu0 0
    %793 = vmatpush1.bf16.msra.mxu0 0
    %794 = vmatprep.subr.bf16.mxu0 0
    %795 = vmatpush1.bf16.msra.mxu0 0
    %796 = vmatprep.subr.bf16.mxu0 0
    %797 = vmatpush1.bf16.msra.mxu0 0
    %798 = vmatprep.subr.bf16.mxu0 0
    %799 = vmatpush1.bf16.msra.mxu0 0
    %800 = vmatprep.subr.bf16.mxu0 0
    %801 = vmatpush1.bf16.msra.mxu0 0
    %802 = vmatprep.subr.bf16.mxu0 0
    %803 = vmatpush1.bf16.msra.mxu0 0
    %804 = vmatprep.subr.bf16.mxu0 0
    %805 = vmatpush1.bf16.msra.mxu0 0
    %806 = vmatprep.subr.bf16.mxu0 0
    %807 = vmatpush1.bf16.msra.mxu0 0
    %808 = vmatprep.subr.bf16.mxu0 0
    %809 = vmatpush1.bf16.msra.mxu0 0
    %810 = vmatprep.subr.bf16.mxu0 0
    %811 = vmatpush1.bf16.msra.mxu0 0
    %812 = vmatprep.subr.bf16.mxu0 0
    %813 = vmatpush1.bf16.msra.mxu0 0
    %814 = vmatprep.mubr.bf16.mxu0 0
    %815 = vmatmul.mubr.bf16.gmra.mrb[0].mxu0 %v780
    %v816 = vpop.f32.mrb[0].mxu0
    %v817 = vadd.f32 0.0, %v816
    %v818 = vpop.f32.mrb[0].mxu0
    %v819 = vpop.f32.mrb[0].mxu0
    %v820 = vadd.f32 0.0, %v819
    %v821 = vpop.f32.mrb[0].mxu0
    %822 = vdwg.mxu0
    %v823 = vadd.f32 %v756, %v817
    %v824 = vadd.f32 %v759, %v820
    %v825 = vrot.slane %v618, 1
    %v826 = vrot.slane %v619, 1
    %vm827 = vcmp.lt.s32.totalorder %v623, 7
    %v828 = vsel %vm827, %v825, %v826
    %v829 = vsel %vm827, %v826, %v825
    %v830 = vld [vmem:[%s4 + $0x70] sm:$0xff]
    %v831 = vld [vmem:[%s4 + $0x78] sm:$0xff]
    %v832 = vmul.f32 %v828, %v830
    %v833 = vmul.f32 %v829, %v831
    %v834 = vpack.c.bf16 %v833, %v832
    %v835 = vld [vmem:[%s2 + $0x50] sm:$0xf]
    %v836 = vld [vmem:[%s2 + $0x54] sm:$0xf]
    %v837 = vld [vmem:[%s2 + $0x58] sm:$0xf]
    %v838 = vld [vmem:[%s2 + $0x5c] sm:$0xf]
    %v843 = vunpack.c.l.b16 %v835
    %v844 = vunpack.c.l.b16 %v836
    %v845 = vunpack.c.l.b16 %v837
    %v846 = vunpack.c.l.b16 %v838
    %v847 = vpack.c.b16 %v844, %v843
    %v848 = vpack.c.b16 %v846, %v845
    %v852 = vsel %vm89, %v834, 0
    %854 = vmatprep.subr.bf16.mxu0 0
    %855 = vmatpush1.bf16.msra.mxu0 %v847
    %856 = vmatprep.subr.bf16.mxu0 0
    %857 = vmatpush1.bf16.msra.mxu0 %v848
    %858 = vmatprep.subr.bf16.mxu0 0
    %859 = vmatpush1.bf16.msra.mxu0 0
    %860 = vmatprep.subr.bf16.mxu0 0
    %861 = vmatpush1.bf16.msra.mxu0 0
    %862 = vmatprep.subr.bf16.mxu0 0
    %863 = vmatpush1.bf16.msra.mxu0 0
    %864 = vmatprep.subr.bf16.mxu0 0
    %865 = vmatpush1.bf16.msra.mxu0 0
    %866 = vmatprep.subr.bf16.mxu0 0
    %867 = vmatpush1.bf16.msra.mxu0 0
    %868 = vmatprep.subr.bf16.mxu0 0
    %869 = vmatpush1.bf16.msra.mxu0 0
    %870 = vmatprep.subr.bf16.mxu0 0
    %871 = vmatpush1.bf16.msra.mxu0 0
    %872 = vmatprep.subr.bf16.mxu0 0
    %873 = vmatpush1.bf16.msra.mxu0 0
    %874 = vmatprep.subr.bf16.mxu0 0
    %875 = vmatpush1.bf16.msra.mxu0 0
    %876 = vmatprep.subr.bf16.mxu0 0
    %877 = vmatpush1.bf16.msra.mxu0 0
    %878 = vmatprep.subr.bf16.mxu0 0
    %879 = vmatpush1.bf16.msra.mxu0 0
    %880 = vmatprep.subr.bf16.mxu0 0
    %881 = vmatpush1.bf16.msra.mxu0 0
    %882 = vmatprep.subr.bf16.mxu0 0
    %883 = vmatpush1.bf16.msra.mxu0 0
    %884 = vmatprep.subr.bf16.mxu0 0
    %885 = vmatpush1.bf16.msra.mxu0 0
    %886 = vmatprep.mubr.bf16.mxu0 0
    %887 = vmatmul.mubr.bf16.gmra.mrb[0].mxu0 %v852
    %v888 = vpop.f32.mrb[0].mxu0
    %v889 = vadd.f32 0.0, %v888
    %v890 = vpop.f32.mrb[0].mxu0
    %v891 = vpop.f32.mrb[0].mxu0
    %v892 = vadd.f32 0.0, %v891
    %v893 = vpop.f32.mrb[0].mxu0
    %894 = vdwg.mxu0
    %v895 = vadd.f32 %v823, %v889
    %v896 = vadd.f32 %v824, %v892
    %v897 = vrot.slane %v618, 2
    %v898 = vrot.slane %v619, 2
    %vm899 = vcmp.lt.s32.totalorder %v623, 6
    %v900 = vsel %vm899, %v897, %v898
    %v901 = vsel %vm899, %v898, %v897
    %v902 = vld [vmem:[%s4 + $0x80] sm:$0xff]
    %v903 = vld [vmem:[%s4 + $0x88] sm:$0xff]
    %v904 = vmul.f32 %v900, %v902
    %v905 = vmul.f32 %v901, %v903
    %v906 = vpack.c.bf16 %v905, %v904
    %v907 = vld [vmem:[%s2 + $0x60] sm:$0xf]
    %v908 = vld [vmem:[%s2 + $0x64] sm:$0xf]
    %v909 = vld [vmem:[%s2 + $0x68] sm:$0xf]
    %v910 = vld [vmem:[%s2 + $0x6c] sm:$0xf]
    %v915 = vunpack.c.l.b16 %v907
    %v916 = vunpack.c.l.b16 %v908
    %v917 = vunpack.c.l.b16 %v909
    %v918 = vunpack.c.l.b16 %v910
    %v919 = vpack.c.b16 %v916, %v915
    %v920 = vpack.c.b16 %v918, %v917
    %v924 = vsel %vm89, %v906, 0
    %926 = vmatprep.subr.bf16.mxu0 0
    %927 = vmatpush1.bf16.msra.mxu0 %v919
    %928 = vmatprep.subr.bf16.mxu0 0
    %929 = vmatpush1.bf16.msra.mxu0 %v920
    %930 = vmatprep.subr.bf16.mxu0 0
    %931 = vmatpush1.bf16.msra.mxu0 0
    %932 = vmatprep.subr.bf16.mxu0 0
    %933 = vmatpush1.bf16.msra.mxu0 0
    %934 = vmatprep.subr.bf16.mxu0 0
    %935 = vmatpush1.bf16.msra.mxu0 0
    %936 = vmatprep.subr.bf16.mxu0 0
    %937 = vmatpush1.bf16.msra.mxu0 0
    %938 = vmatprep.subr.bf16.mxu0 0
    %939 = vmatpush1.bf16.msra.mxu0 0
    %940 = vmatprep.subr.bf16.mxu0 0
    %941 = vmatpush1.bf16.msra.mxu0 0
    %942 = vmatprep.subr.bf16.mxu0 0
    %943 = vmatpush1.bf16.msra.mxu0 0
    %944 = vmatprep.subr.bf16.mxu0 0
    %945 = vmatpush1.bf16.msra.mxu0 0
    %946 = vmatprep.subr.bf16.mxu0 0
    %947 = vmatpush1.bf16.msra.mxu0 0
    %948 = vmatprep.subr.bf16.mxu0 0
    %949 = vmatpush1.bf16.msra.mxu0 0
    %950 = vmatprep.subr.bf16.mxu0 0
    %951 = vmatpush1.bf16.msra.mxu0 0
    %952 = vmatprep.subr.bf16.mxu0 0
    %953 = vmatpush1.bf16.msra.mxu0 0
    %954 = vmatprep.subr.bf16.mxu0 0
    %955 = vmatpush1.bf16.msra.mxu0 0
    %956 = vmatprep.subr.bf16.mxu0 0
    %957 = vmatpush1.bf16.msra.mxu0 0
    %958 = vmatprep.mubr.bf16.mxu0 0
    %959 = vmatmul.mubr.bf16.gmra.mrb[0].mxu0 %v924
    %v960 = vpop.f32.mrb[0].mxu0
    %v961 = vadd.f32 0.0, %v960
    %v962 = vpop.f32.mrb[0].mxu0
    %v963 = vpop.f32.mrb[0].mxu0
    %v964 = vadd.f32 0.0, %v963
    %v965 = vpop.f32.mrb[0].mxu0
    %966 = vdwg.mxu0
    %v967 = vadd.f32 %v895, %v961
    %v968 = vadd.f32 %v896, %v964
    %v969 = vmax.f32 %v967, 0.0
    %v970 = vmax.f32 %v968, 0.0
    %v971 = vpack.c.bf16 %v970, %v969
    %v976 = vunpack.c.l.b16 %v30
    %v977 = vunpack.c.l.b16 %v31
    %v978 = vunpack.c.l.b16 %v32
    %v979 = vunpack.c.l.b16 %v33
    %v980 = vpack.c.b16 %v977, %v976
    %v981 = vpack.c.b16 %v979, %v978
    %v985 = vsel %vm89, %v971, 0
    %987 = vmatprep.subr.bf16.mxu0 0
    %988 = vmatpush1.bf16.msra.mxu0 %v980
    %989 = vmatprep.subr.bf16.mxu0 0
    %990 = vmatpush1.bf16.msra.mxu0 %v981
    %991 = vmatprep.subr.bf16.mxu0 0
    %992 = vmatpush1.bf16.msra.mxu0 0
    %993 = vmatprep.subr.bf16.mxu0 0
    %994 = vmatpush1.bf16.msra.mxu0 0
    %995 = vmatprep.subr.bf16.mxu0 0
    %996 = vmatpush1.bf16.msra.mxu0 0
    %997 = vmatprep.subr.bf16.mxu0 0
    %998 = vmatpush1.bf16.msra.mxu0 0
    %999 = vmatprep.subr.bf16.mxu0 0
    %1000 = vmatpush1.bf16.msra.mxu0 0
    %1001 = vmatprep.subr.bf16.mxu0 0
    %1002 = vmatpush1.bf16.msra.mxu0 0
    %1003 = vmatprep.subr.bf16.mxu0 0
    %1004 = vmatpush1.bf16.msra.mxu0 0
    %1005 = vmatprep.subr.bf16.mxu0 0
    %1006 = vmatpush1.bf16.msra.mxu0 0
    %1007 = vmatprep.subr.bf16.mxu0 0
    %1008 = vmatpush1.bf16.msra.mxu0 0
    %1009 = vmatprep.subr.bf16.mxu0 0
    %1010 = vmatpush1.bf16.msra.mxu0 0
    %1011 = vmatprep.subr.bf16.mxu0 0
    %1012 = vmatpush1.bf16.msra.mxu0 0
    %1013 = vmatprep.subr.bf16.mxu0 0
    %1014 = vmatpush1.bf16.msra.mxu0 0
    %1015 = vmatprep.subr.bf16.mxu0 0
    %1016 = vmatpush1.bf16.msra.mxu0 0
    %1017 = vmatprep.subr.bf16.mxu0 0
    %1018 = vmatpush1.bf16.msra.mxu0 0
    %1019 = vmatprep.mubr.bf16.mxu0 0
    %1020 = vmatmul.mubr.bf16.gmra.mrb[0].mxu0 %v985
    %v1021 = vpop.f32.mrb[0].mxu0
    %v1022 = vadd.f32 %v557, %v1021
    %v1023 = vpop.f32.mrb[0].mxu0
    %v1024 = vpop.f32.mrb[0].mxu0
    %v1025 = vadd.f32 %v558, %v1024
    %v1026 = vpop.f32.mrb[0].mxu0
    %1027 = vdwg.mxu0
    %v1028 = vsel %vm89, %v1022, 0.0
    %1029 = vadd.xlane.f32.xlu0 %v1028
    %v1030 = vpop.xlane.xlu0 %1029
    %v1031 = vsel %vm89, %v1025, 0.0
    %1032 = vadd.xlane.f32.xlu0 %v1031
    %v1033 = vpop.xlane.xlu0 %1032
    %v1034 = vmul.f32 %v1030, %v526
    %v1035 = vmul.f32 %v1033, %v526
    %v1036 = vsub.f32 %v1022, %v1034
    %v1037 = vsub.f32 %v1025, %v1035
    %v1038 = vmul.f32 %v1036, %v1036
    %v1039 = vmul.f32 %v1037, %v1037
    %v1040 = vsel %vm89, %v1038, 0.0
    %1041 = vadd.xlane.f32.xlu0 %v1040
    %v1042 = vpop.xlane.xlu0 %1041
    %v1043 = vsel %vm89, %v1039, 0.0
    %1044 = vadd.xlane.f32.xlu0 %v1043
    %v1045 = vpop.xlane.xlu0 %1044
    %v1046 = vmul.f32 %v1042, %v526
    %v1047 = vmul.f32 %v1045, %v526
    %v1048 = vadd.f32 %v1046, 1e-05
    %v1049 = vadd.f32 %v1047, 1e-05
    %v1050 = vrsqrt.pop %v1048
    %v1051 = vrsqrt.pop %v1049
    %v1052 = vmul.f32 %v1036, %v1050
    %v1053 = vmul.f32 %v1037, %v1051
    %v1054 = vlaneseq
    %v1055 = vshrl.u32 %v1054, 7
    %v1056 = vsub.s32 0, %v1055
    %v1057 = vrot.slane %v36, %v1056
    %v1058 = vmul.f32 %v1052, %v1057
    %v1059 = vmul.f32 %v1053, %v1057
    %v1060 = vlaneseq
    %v1061 = vshrl.u32 %v1060, 7
    %v1062 = vsub.s32 0, %v1061
    %v1063 = vrot.slane %v37, %v1062
    %v1064 = vadd.f32 %v1058, %v1063
    %v1065 = vadd.f32 %v1059, %v1063
    %1066 = vst.msk [vmem:[#allocation2] sm:$0xff] %vm89, %v1064
    %1067 = vst.msk [vmem:[#allocation2 + $0x8] sm:$0xff] %vm89, %v1065
    // Predicated region
    $region22: #{tpu_custom_call.1} parent=1 // pred_check
      _
    $region23: #{tpu_custom_call.1} parent=1 // pred_check_branch
      %1069 = sbr.rel (0) target = $region25
    $region24: #{tpu_custom_call.1} parent=1 // pred_region
      %s1071 = ssub.s32 256, 256
      %1072 = vsyncadd [#allocation3], %s1071
      %s1073 = sshll.u32 [#allocation2], 4
      %s1074 = int_to_ptr.vmem [resolvable:$true] %s1073
      %1079 = dma.vmem_to_hbm [thread:$0]  %s1074, 256, %s5, [#allocation3], 128, 128, 8
    $region25: #{tpu_custom_call.1} parent=1 // pred_fallthru
      _
    // Predicated region
    $region26: #{tpu_custom_call.1} parent=1 // pred_check
      _
    $region27: #{tpu_custom_call.1} parent=1 // pred_check_branch
      %1081 = sbr.rel (0) target = $region29
    $region28: #{tpu_custom_call.1} parent=1 // pred_region
      %1082 = dma.done [#allocation3], 256
    $region29: #{tpu_custom_call.1} parent=1 // pred_fallthru
      _
    %1083 = vsyncpa [#allocation3], 1

</llo_original>
